<compile_context>
chip_gen: v7x
topology: tpu7x:2x2x1
jax: 0.10.0
libtpu: 0.0.40
codegen_flags: <defaults>
</compile_context>

<pallas_src>
import jax
import jax.numpy as jnp
from jax.experimental import pallas as pl
from jax.experimental.pallas import tpu as pltpu

_EPS = 1e-8  # F.cosine_similarity eps


def _weat_kernel(x01_ref, d_ref, o_ref):
    """x01_ref: [TB, 2H] (seq positions 0|1 concatenated, native dtype),
    d_ref: [1, H] f32 mean-direction vector, o_ref: [TB, 1] f32 scores."""
    h = d_ref.shape[-1]
    eps2 = jnp.float32(_EPS) * jnp.float32(_EPS)

    d = d_ref[...]                                    # [1, H] f32 (resident)
    x01 = x01_ref[...].astype(jnp.float32)            # [TB, 2H]
    x0 = x01[:, :h]
    x1 = x01[:, h:]

    # Per-row dot with d + per-row squared norm (VPU mul + XLU lane reduce);
    # rsqrt(max(|x|^2, eps^2)) == 1 / max(|x|, eps)  -> one EUP push per row.
    dot0 = jnp.sum(x0 * d, axis=-1, keepdims=True)    # [TB, 1]
    dot1 = jnp.sum(x1 * d, axis=-1, keepdims=True)
    nsq0 = jnp.sum(x0 * x0, axis=-1, keepdims=True)
    nsq1 = jnp.sum(x1 * x1, axis=-1, keepdims=True)
    score = (dot0 * jax.lax.rsqrt(jnp.maximum(nsq0, eps2))
             - dot1 * jax.lax.rsqrt(jnp.maximum(nsq1, eps2)))
    o_ref[...] = score.astype(o_ref.dtype)            # [TB, 1] f32


def _ceil_div(a, b):
    return -(-a // b)


def _round_up(a, m):
    return _ceil_div(a, m) * m


def _choose_block_b(B, H, itemsize):
    # VMEM budget for the double-buffered (block_b, 2H) x tile: conservative for
    # v7x (64 MiB physical / 32 MiB default scoped) and v5e (16 MiB default scoped).
    budget = 12 * 1024 * 1024
    per_row = 2 * (2 * H) * itemsize                  # 2 pipeline buffers x 2H columns
    cap = max(8, min(1024, (budget // max(per_row, 1)) // 8 * 8))
    if B <= 8:
        return B                                      # single tile; block == full dim
    # Aim for >= 2 grid steps so the "parallel" batch axis shards across v7x's 2 TCs.
    target = _round_up(_ceil_div(B, 2), 8)
    return max(8, min(cap, target, _round_up(B, 8)))


def weat_probe_forward(x, word_vecs1, word_vecs2, *, block_b=None):
    """x: [B, L, H]; word_vecs1: [N1, H]; word_vecs2: [N2, H]. Returns [B] f32 WEAT scores.

    For B == 1 this equals the PyTorch module's scalar output (the torch code only
    supports batch 1 due to its repeat/broadcast); this kernel vectorizes over B.
    """
    B, L, H = x.shape
    assert L >= 2, "WeatProbe.forward uses sequence positions 0 and 1"
    assert word_vecs1.shape[-1] == H and word_vecs2.shape[-1] == H

    # Parameter-only precompute, hoisted out of the per-grid-step body:
    #   d = mean_i normalize(w1_i) - mean_i normalize(w2_i)        -> [1, H] f32
    def _mean_dir(w):
        w = w.astype(jnp.float32)
        n = jnp.maximum(jnp.sqrt(jnp.sum(w * w, axis=-1, keepdims=True)), _EPS)
        return jnp.mean(w / n, axis=0, keepdims=True)

    d = _mean_dir(word_vecs1) - _mean_dir(word_vecs2)              # [1, H] f32

    # Present x so only positions 0 and 1 are DMA'd (no wrapper slice copy when possible):
    #  * L == 2        -> free contiguous reshape to (B, 2H).
    #  * H % 128 == 0  -> free reshape to (B, L*H); the (block_b, 2H) block DMAs just
    #                     the first 2H lanes of each row straight from HBM.
    #  * otherwise     -> small-H fallback: one XLA slice copy so the kernel's block
    #                     still spans the full last dim (layout-legal for any H).
    if L == 2:
        x01 = x.reshape(B, 2 * H)
    elif H % 128 == 0:
        x01 = x.reshape(B, L * H)
    else:
        x01 = x[:, :2, :].reshape(B, 2 * H)

    itemsize = jnp.dtype(x.dtype).itemsize
    if block_b is None:
        block_b = _choose_block_b(B, H, itemsize)
    grid = (pl.cdiv(B, block_b),)

    # Scoped-VMEM limit: x double-buffers + resident d + output + f32 temporaries.
    x_buf = 2 * block_b * 2 * H * itemsize
    vmem_limit = int(min(60 * 2**20,
                         max(32 * 2**20,
                             x_buf + 2 * H * 4 + 2 * block_b * 4
                             + 3 * block_b * H * 4 + (2 << 20))))

    out = pl.pallas_call(
        _weat_kernel,
        out_shape=jax.ShapeDtypeStruct((B, 1), jnp.float32),
        grid=grid,
        in_specs=[
            pl.BlockSpec((block_b, 2 * H), lambda i: (i, 0)),   # seq positions 0|1 of this batch tile
            pl.BlockSpec((1, H), lambda i: (0, 0)),             # mean-direction vector (resident)
        ],
        out_specs=pl.BlockSpec((block_b, 1), lambda i: (i, 0)),
        compiler_params=pltpu.CompilerParams(
            dimension_semantics=("parallel",),
            vmem_limit_bytes=vmem_limit),
    )(x01, d)
    return out[:, 0]                                             # [B] float32


def weat_probe_reference(x, word_vecs1, word_vecs2, eps=_EPS):
    """Pure-JAX mirror of the PyTorch forward (vectorized over batch), f32 compute."""
    x = x.astype(jnp.float32)
    w1 = word_vecs1.astype(jnp.float32)
    w2 = word_vecs2.astype(jnp.float32)

    def mean_cos(v, w):
        vn = v / jnp.maximum(jnp.linalg.norm(v, axis=-1, keepdims=True), eps)   # [B, H]
        wn = w / jnp.maximum(jnp.linalg.norm(w, axis=-1, keepdims=True), eps)   # [N, H]
        cos = jnp.einsum('bh,nh->bn', vn, wn, precision=jax.lax.Precision.HIGHEST)
        return cos.mean(axis=-1)                                                # [B]

    x0, x1 = x[:, 0, :], x[:, 1, :]
    return (mean_cos(x0, w1) - mean_cos(x0, w2)) - (mean_cos(x1, w1) - mean_cos(x1, w2))


if __name__ == "__main__":
    key = jax.random.PRNGKey(0)

    # Small deterministic cases covering all wrapper paths:
    #   1) odd H          -> small-H fallback (wrapper slice), single grid step
    #   2) H % 128 == 0   -> direct-DMA packed path, 2 grid steps (megacore-friendly)
    #   3) L == 2, bf16   -> native-dtype input, f32 compute/output
    cases = [
        (2, 8, 32, 16, 24, jnp.float32),
        (16, 4, 128, 8, 12, jnp.float32),
        (4, 2, 256, 8, 8, jnp.bfloat16),
    ]
    for idx, (B, L, H, N1, N2, dt) in enumerate(cases):
        kx, k1, k2, key = jax.random.split(key, 4)
        x = jax.random.normal(kx, (B, L, H), dtype=jnp.float32).astype(dt)
        word_vecs1 = jax.random.normal(k1, (N1, H), dtype=jnp.float32)
        word_vecs2 = jax.random.normal(k2, (N2, H), dtype=jnp.float32)

        out = jax.block_until_ready(weat_probe_forward(x, word_vecs1, word_vecs2))
        ref = weat_probe_reference(x, word_vecs1, word_vecs2)

        assert out.shape == (B,), (idx, out.shape)
        assert out.dtype == jnp.float32, (idx, out.dtype)
        tol = 1e-4 if dt == jnp.float32 else 1e-3
        assert jnp.allclose(out, ref, atol=tol, rtol=tol), (idx, out, ref)

    print("KERNEL_OK")
</pallas_src>

<mosaic_0001>
module attributes {stable_mosaic.version = 11 : i64} {
  func.func @_weat_kernel(%arg0: i32, %arg1: memref<2x64xf32, #tpu.memory_space<vmem>>, %arg2: memref<1x32xf32, #tpu.memory_space<vmem>>, %arg3: memref<2x1xf32, #tpu.memory_space<vmem>>) attributes {dimension_semantics = [#tpu.dimension_semantics<parallel>], iteration_bounds = array<i64: 1>, scalar_prefetch = 0 : i64, scratch_operands = 0 : i64, tpu.core_type = #tpu.core_type<tc>, window_params = [{transform_indices = @transform_0, window_bounds = array<i64: 2, 64>}, {pipeline_mode = #tpu.pipeline_mode<synchronous>, transform_indices = @transform_1, window_bounds = array<i64: 1, 32>}, {transform_indices = @transform_2, window_bounds = array<i64: 2, 1>}]} {
    %cst = arith.constant 9.99999993E-9 : f32
    %cst_0 = arith.constant 9.99999993E-9 : f32
    %0 = arith.mulf %cst, %cst_0 : f32
    %c0 = arith.constant 0 : index
    %c0_1 = arith.constant 0 : index
    %1 = vector.load %arg2[%c0, %c0_1] : memref<1x32xf32, #tpu.memory_space<vmem>>, vector<1x32xf32>
    %c0_2 = arith.constant 0 : index
    %c0_3 = arith.constant 0 : index
    %2 = vector.load %arg1[%c0_2, %c0_3] : memref<2x64xf32, #tpu.memory_space<vmem>>, vector<2x64xf32>
    %3 = vector.extract_strided_slice %2 {offsets = [0, 0], sizes = [2, 32], strides = [1, 1]} : vector<2x64xf32> to vector<2x32xf32>
    %4 = vector.extract_strided_slice %2 {offsets = [0, 32], sizes = [2, 32], strides = [1, 1]} : vector<2x64xf32> to vector<2x32xf32>
    %5 = vector.broadcast %1 : vector<1x32xf32> to vector<2x32xf32>
    %6 = arith.mulf %3, %5 : vector<2x32xf32>
    %cst_4 = arith.constant dense<0.000000e+00> : vector<2xf32>
    %7 = vector.multi_reduction <add>, %6, %cst_4 [1] : vector<2x32xf32> to vector<2xf32>
    %8 = vector.shape_cast %7 : vector<2xf32> to vector<2x1xf32>
    %9 = vector.broadcast %1 : vector<1x32xf32> to vector<2x32xf32>
    %10 = arith.mulf %4, %9 : vector<2x32xf32>
    %cst_5 = arith.constant dense<0.000000e+00> : vector<2xf32>
    %11 = vector.multi_reduction <add>, %10, %cst_5 [1] : vector<2x32xf32> to vector<2xf32>
    %12 = vector.shape_cast %11 : vector<2xf32> to vector<2x1xf32>
    %13 = arith.mulf %3, %3 : vector<2x32xf32>
    %cst_6 = arith.constant dense<0.000000e+00> : vector<2xf32>
    %14 = vector.multi_reduction <add>, %13, %cst_6 [1] : vector<2x32xf32> to vector<2xf32>
    %15 = vector.shape_cast %14 : vector<2xf32> to vector<2x1xf32>
    %16 = arith.mulf %4, %4 : vector<2x32xf32>
    %cst_7 = arith.constant dense<0.000000e+00> : vector<2xf32>
    %17 = vector.multi_reduction <add>, %16, %cst_7 [1] : vector<2x32xf32> to vector<2xf32>
    %18 = vector.shape_cast %17 : vector<2xf32> to vector<2x1xf32>
    %19 = vector.broadcast %0 : f32 to vector<2x1xf32>
    %20 = arith.maximumf %15, %19 : vector<2x1xf32>
    %21 = math.rsqrt %20 : vector<2x1xf32>
    %22 = arith.mulf %8, %21 : vector<2x1xf32>
    %23 = vector.broadcast %0 : f32 to vector<2x1xf32>
    %24 = arith.maximumf %18, %23 : vector<2x1xf32>
    %25 = math.rsqrt %24 : vector<2x1xf32>
    %26 = arith.mulf %12, %25 : vector<2x1xf32>
    %27 = arith.subf %22, %26 : vector<2x1xf32>
    %c0_8 = arith.constant 0 : index
    %c0_9 = arith.constant 0 : index
    %28 = vector.load %arg3[%c0_8, %c0_9] : memref<2x1xf32, #tpu.memory_space<vmem>>, vector<2x1xf32>
    tpu.vector_store %arg3[%c0_8, %c0_9], %27 {strides = array<i32>} : memref<2x1xf32, #tpu.memory_space<vmem>>, vector<2x1xf32>,
    return
  }
  func.func @transform_0(%arg0: i32) -> (i32, i32) {
    %c0_i32 = arith.constant 0 : i32
    %c0_i32_0 = arith.constant 0 : i32
    return %arg0, %c0_i32 : i32, i32
  }
  func.func @transform_1(%arg0: i32) -> (i32, i32) {
    %c0_i32 = arith.constant 0 : i32
    %c0_i32_0 = arith.constant 0 : i32
    %c0_i32_1 = arith.constant 0 : i32
    return %c0_i32, %c0_i32_0 : i32, i32
  }
  func.func @transform_2(%arg0: i32) -> (i32, i32) {
    %c0_i32 = arith.constant 0 : i32
    %c0_i32_0 = arith.constant 0 : i32
    return %arg0, %c0_i32 : i32, i32
  }
}

</mosaic_0001>

<llo_original>
// kernel: tpu_custom_call.1
$region0: #{tpu_custom_call.1}
  #allocation0 [shape = 'u32[]', space=smem, size = 0x4, offset = 0x4, fixed_abs, tag = 'smem constant byte address 0x4 - core index']
  #allocation1 [shape = 'u32[144,128]{1,0:T(1,128)}', space=vmem, size = 0x12000, scoped, tag = 'internal scratch']
  %s0 = inlined_call_operand.hbm [shape: f32[2,64], index: 0, kind: input, shape index: {}]
  %s1 = inlined_call_operand.vmem [shape: f32[1,32], index: 1, kind: input, shape index: {}]
  %s2 = inlined_call_operand.vmem [shape: f32[2,1], index: 2, kind: output, shape index: {}]
  %s3 = sld [smem:[#allocation0]]
  $region22: #{tpu_custom_call.1} parent=0
    _
  %s5 = ssub.s32 1, %s3
  %s6 = scalar_select 0, %s5, %s3
  $region1: #{tpu_custom_call.1} parent=0
    #allocation2 [shape = 'u8[1024]{0}', space=vmem, size = 0x400, scoped, tag = 'input window, operand 0, single buffered']
    #allocation3 [shape = 's32[1]{0}', space=sflag, size = 0x4, scoped, tag = 'scoped memory for tpu_custom_call.1']
    %7 = vsyncpa [#allocation3], 0
    // Predicated region
    $region2: #{tpu_custom_call.1} parent=1 // pred_check
      _
    $region3: #{tpu_custom_call.1} parent=1 // pred_check_branch
      %9 = sbr.rel (0) target = $region5
    $region4: #{tpu_custom_call.1} parent=1 // pred_region
      %s11 = ssub.s32 32, 32
      %12 = vsyncadd [#allocation3], %s11
      %s14 = sshll.u32 [#allocation2], 4
      %s15 = int_to_ptr.vmem [resolvable:$true] %s14
      %17 = dma.hbm_to_vmem [thread:$0]  %s0, 32, %s15, [#allocation3]
    $region5: #{tpu_custom_call.1} parent=1 // pred_fallthru
      _
    // Predicated region
    $region6: #{tpu_custom_call.1} parent=1 // pred_check
      _
    $region7: #{tpu_custom_call.1} parent=1 // pred_check_branch
      %19 = sbr.rel (0) target = $region9
    $region8: #{tpu_custom_call.1} parent=1 // pred_region
      _
    $region9: #{tpu_custom_call.1} parent=1 // pred_fallthru
      _
    // Predicated region
    $region10: #{tpu_custom_call.1} parent=1 // pred_check
      _
    $region11: #{tpu_custom_call.1} parent=1 // pred_check_branch
      %21 = sbr.rel (0) target = $region13
    $region12: #{tpu_custom_call.1} parent=1 // pred_region
      %22 = dma.done [#allocation3], 32
    $region13: #{tpu_custom_call.1} parent=1 // pred_fallthru
      _
    %v23 = vld [vmem:[%s1] sm:$0x1]
    %v24 = vld [vmem:[#allocation2] sm:$0x3]
    %v26 = vlaneseq
    %v27 = vshrl.u32 %v26, 7
    %v28 = vsub.s32 0, %v27
    %v29 = vrot.slane %v23, %v28
    %v31 = vmul.f32 %v24, %v29
    %vm32 = vcmask 254976
    %v33 = vsel %vm32, %v31, 0.0
    %34 = vadd.xlane.f32.xlu0 %v33
    %v35 = vpop.xlane.xlu0 %34
    %36 = vrot.lane.b32.xlu0 %v29, 32
    %v37 = vpop.permute.xlu0 %36
    %v39 = vmul.f32 %v24, %v37
    %41 = vrot.lane.b32.xlu0 %v39, 96
    %v42 = vpop.permute.xlu0 %41
    %v44 = vsel %vm32, %v42, 0.0
    %45 = vadd.xlane.f32.xlu0 %v44
    %v46 = vpop.xlane.xlu0 %45
    %v47 = vmul.f32 %v24, %v24
    %v48 = vsel %vm32, %v47, 0.0
    %49 = vadd.xlane.f32.xlu0 %v48
    %v50 = vpop.xlane.xlu0 %49
    %52 = vrot.lane.b32.xlu0 %v47, 96
    %v53 = vpop.permute.xlu0 %52
    %v55 = vsel %vm32, %v53, 0.0
    %56 = vadd.xlane.f32.xlu0 %v55
    %v57 = vpop.xlane.xlu0 %56
    %v58 = vmax.f32 %v50, 1e-16
    %v59 = vrsqrt.pop %v58
    %v60 = vmul.f32 %v35, %v59
    %v61 = vmax.f32 %v57, 1e-16
    %v62 = vrsqrt.pop %v61
    %v63 = vmul.f32 %v46, %v62
    %v64 = vsub.f32 %v60, %v63
    %vm65 = vcmask 1024
    %66 = vst.msk [vmem:[%s2] sm:$0x3] %vm65, %v64
    // Predicated region
    $region14: #{tpu_custom_call.1} parent=1 // pred_check
      _
    $region15: #{tpu_custom_call.1} parent=1 // pred_check_branch
      %68 = sbr.rel (0) target = $region17
    $region16: #{tpu_custom_call.1} parent=1 // pred_region
      _
    $region17: #{tpu_custom_call.1} parent=1 // pred_fallthru
      _
    // Predicated region
    $region18: #{tpu_custom_call.1} parent=1 // pred_check
      _
    $region19: #{tpu_custom_call.1} parent=1 // pred_check_branch
      %70 = sbr.rel (0) target = $region21
    $region20: #{tpu_custom_call.1} parent=1 // pred_region
      _
    $region21: #{tpu_custom_call.1} parent=1 // pred_fallthru
      _
    %71 = vsyncpa [#allocation3], 1

</llo_original>
